<compile_context>
chip_gen: v6e
topology: v6e:2x2x1
jax: 0.10.0
libtpu: 0.0.40
codegen_flags: <defaults>
</compile_context>

<pallas_src>
import functools

import jax
import jax.numpy as jnp
from jax.experimental import pallas as pl
from jax.experimental.pallas import tpu as pltpu


def _round_up(x, m):
    return ((x + m - 1) // m) * m


# ----------------------------------------------------------------------------
# Pallas kernels
# ----------------------------------------------------------------------------
def _gemm_bias_kernel(a_ref, b_ref, c_ref, o_ref, *, relu):
    acc = jnp.dot(a_ref[...], b_ref[...], preferred_element_type=jnp.float32)
    acc = acc + c_ref[...]
    if relu:
        acc = jnp.maximum(acc, 0.0)
    o_ref[...] = acc


def _gemm_bias_res_kernel(a_ref, b_ref, c_ref, r_ref, o_ref, *, relu):
    acc = jnp.dot(a_ref[...], b_ref[...], preferred_element_type=jnp.float32)
    acc = acc + c_ref[...] + r_ref[...]
    if relu:
        acc = jnp.maximum(acc, 0.0)
    o_ref[...] = acc


def _maxpool9_kernel(p_ref, o_ref):
    # p_ref: (9, tileM, C), taps on the leading axis -> lane-dense loads.
    m = p_ref[0]
    for k in range(1, 9):
        m = jnp.maximum(m, p_ref[k])
    o_ref[...] = m


# ----------------------------------------------------------------------------
# Kernel wrappers
# ----------------------------------------------------------------------------
def fused_gemm_bias(a, b, bias, residual=None, relu=True):
    """out = maybe_relu((a @ b) + bias [+ residual]); bf16 operands, f32 acc."""
    M, K = a.shape
    _, N = b.shape

    # Adaptive row tile: round M up to a multiple of 16 (safe for bf16 sublane
    # packing), capped at 128 -- avoids padding M=2..32 deep-layer rows to 128.
    BM = min(128, _round_up(M, 16))
    Mp = _round_up(M, BM)
    if Mp != M:
        a = jnp.pad(a, ((0, Mp - M), (0, 0)))
        if residual is not None:
            residual = jnp.pad(residual, ((0, Mp - M), (0, 0)))
    bn = N if N < 128 else 128
    m_tiles, n_tiles = Mp // BM, N // bn

    # Choose loop order so the heavier operand stays VMEM-resident across the
    # inner axis (minimize HBM re-reads).
    cost_m_outer = a.nbytes + m_tiles * b.nbytes   # B re-streamed per row panel
    cost_n_outer = b.nbytes + n_tiles * a.nbytes   # A re-streamed per col panel
    if cost_m_outer <= cost_n_outer:
        grid = (m_tiles, n_tiles)
        am = lambda i, j: (i, 0)
        bm = lambda i, j: (0, j)
        vm = lambda i, j: (0, j)
        om = lambda i, j: (i, j)
    else:
        grid = (n_tiles, m_tiles)
        am = lambda j, i: (i, 0)
        bm = lambda j, i: (0, j)
        vm = lambda j, i: (0, j)
        om = lambda j, i: (i, j)

    in_specs = [
        pl.BlockSpec((BM, K), am),
        pl.BlockSpec((K, bn), bm),
        pl.BlockSpec((1, bn), vm),
    ]
    args = [a, b, bias]
    if residual is not None:
        in_specs.append(pl.BlockSpec((BM, bn), om))
        args.append(residual)
        kernel = functools.partial(_gemm_bias_res_kernel, relu=relu)
    else:
        kernel = functools.partial(_gemm_bias_kernel, relu=relu)

    out_bytes = Mp * N * 4
    bytes_accessed = a.nbytes + b.nbytes + bias.nbytes + out_bytes
    if residual is not None:
        bytes_accessed += residual.nbytes

    out = pl.pallas_call(
        kernel,
        out_shape=jax.ShapeDtypeStruct((Mp, N), jnp.float32),
        grid=grid,
        in_specs=in_specs,
        out_specs=pl.BlockSpec((BM, bn), om),
        compiler_params=pltpu.CompilerParams(
            dimension_semantics=("parallel", "parallel")),
        cost_estimate=pl.CostEstimate(
            flops=2 * Mp * K * N, transcendentals=0,
            bytes_accessed=bytes_accessed),
    )(*args)
    return out[:M]


def _im2col(x, kh, kw, stride, padding):
    """x: (N, H, W, C) -> ((N*Ho*Wo, kh*kw*C), Ho, Wo)."""
    N, H, W, C = x.shape
    xp = jnp.pad(x, ((0, 0), (padding, padding), (padding, padding), (0, 0)))
    Hp, Wp = H + 2 * padding, W + 2 * padding
    Ho = (Hp - kh) // stride + 1
    Wo = (Wp - kw) // stride + 1
    cols = [xp[:, i:i + stride * Ho:stride, j:j + stride * Wo:stride, :]
            for i in range(kh) for j in range(kw)]
    patches = jnp.stack(cols, axis=3)  # (N, Ho, Wo, kh*kw, C)
    return patches.reshape(N * Ho * Wo, kh * kw * C), Ho, Wo


def conv_bn(x, cp, stride, padding, relu=True, residual=None):
    """Conv2d (bias=False) + folded BN [+ residual] [+ ReLU].

    cp: prepared conv params {"wmat" (K, Cout) bf16 with BN scale folded in,
    "bias" (1, Cout) f32, "kh", "kw", "cout"}.  All heavy math runs inside
    the fused Pallas GEMM kernel.
    """
    N, H, W, C = x.shape
    kh, kw, Cout = cp["kh"], cp["kw"], cp["cout"]
    if kh == 1 and kw == 1:
        # Fast path: no im2col materialization for 1x1 convs.
        xs = x if stride == 1 else x[:, ::stride, ::stride, :]
        _, Ho, Wo, _ = xs.shape
        a = xs.reshape(N * Ho * Wo, C)
    else:
        a, Ho, Wo = _im2col(x, kh, kw, stride, padding)
    a = a.astype(jnp.bfloat16)
    res = residual.reshape(N * Ho * Wo, Cout) if residual is not None else None
    out = fused_gemm_bias(a, cp["wmat"], cp["bias"], residual=res, relu=relu)
    return out.reshape(N, Ho, Wo, Cout)


def maxpool_3x3_s2_p1(x):
    N, H, W, C = x.shape
    neg = jnp.finfo(x.dtype).min
    xp = jnp.pad(x, ((0, 0), (1, 1), (1, 1), (0, 0)), constant_values=neg)
    Ho = (H + 2 - 3) // 2 + 1
    Wo = (W + 2 - 3) // 2 + 1
    M = N * Ho * Wo
    cols = [xp[:, i:i + 2 * Ho:2, j:j + 2 * Wo:2, :].reshape(M, C)
            for i in range(3) for j in range(3)]
    p = jnp.stack(cols, axis=0)  # (9, M, C): taps leading -> lane-dense blocks
    TM = min(512, _round_up(M, 8))
    Mp = _round_up(M, TM)
    if Mp != M:
        p = jnp.pad(p, ((0, 0), (0, Mp - M), (0, 0)), constant_values=neg)
    out = pl.pallas_call(
        _maxpool9_kernel,
        out_shape=jax.ShapeDtypeStruct((Mp, C), x.dtype),
        grid=(Mp // TM,),
        in_specs=[pl.BlockSpec((9, TM, C), lambda i: (0, i, 0))],
        out_specs=pl.BlockSpec((TM, C), lambda i: (i, 0)),
        compiler_params=pltpu.CompilerParams(
            dimension_semantics=("parallel",)),
    )(p)
    return out[:M].reshape(N, Ho, Wo, C)


def dropout2d(x, rate=0.3):
    # TODO(synk): training-mode Dropout2d (per-channel Bernoulli mask scaled by
    # 1/(1-p)) is not reproducible bit-exactly vs torch RNG; eval-mode
    # semantics (identity) are implemented here.
    return x


# ----------------------------------------------------------------------------
# Deterministic parameter construction (shapes match ResNet50_Dropout.__init__)
# ----------------------------------------------------------------------------
def _conv_w(key, cout, cin, kh, kw):
    fan_in = cin * kh * kw
    return jax.random.normal(key, (cout, cin, kh, kw), jnp.float32) * (2.0 / fan_in) ** 0.5


def _bn(key, c, eps=1e-5):
    k1, k2 = jax.random.split(key)
    gamma = 1.0 + 0.1 * jax.random.normal(k1, (c,), jnp.float32)
    beta = 0.01 * jax.random.normal(k2, (c,), jnp.float32)
    mean = jnp.zeros((c,), jnp.float32)
    var = jnp.ones((c,), jnp.float32)
    scale = gamma / jnp.sqrt(var + eps)
    bias = beta - mean * scale
    return scale, bias


def _prep_conv(w, scale, bias):
    """Fold BN scale into the GEMM weight matrix once, pre-transpose to (K, Cout)."""
    Cout, Cin, kh, kw = w.shape
    wmat = jnp.transpose(w, (2, 3, 1, 0)).reshape(kh * kw * Cin, Cout)
    wmat = (wmat * scale[None, :]).astype(jnp.bfloat16)
    return {"wmat": wmat, "bias": bias.astype(jnp.float32).reshape(1, Cout),
            "kh": kh, "kw": kw, "cout": Cout}


def _make_conv(nk, cout, cin, kh, kw):
    w = _conv_w(nk(), cout, cin, kh, kw)
    scale, bias = _bn(nk(), cout)
    return _prep_conv(w, scale, bias)


def init_params(key):
    keys = iter(jax.random.split(key, 256))
    nk = lambda: next(keys)
    params = {}
    params["conv1"] = _make_conv(nk, 64, 3, 7, 7)
    inplanes = 64
    cfg = [("layer1", 64, 3, 1), ("layer2", 128, 4, 2),
           ("layer3", 256, 6, 2), ("layer4", 512, 3, 2)]
    for name, planes, blocks, stride in cfg:
        blks = []
        for b in range(blocks):
            s = stride if b == 0 else 1
            p = {"stride": s}
            p["c1"] = _make_conv(nk, planes, inplanes, 1, 1)
            p["c2"] = _make_conv(nk, planes, planes, 3, 3)
            p["c3"] = _make_conv(nk, planes * 4, planes, 1, 1)
            if b == 0 and (s != 1 or inplanes != planes * 4):
                p["ds"] = _make_conv(nk, planes * 4, inplanes, 1, 1)
            blks.append(p)
            inplanes = planes * 4
        params[name] = blks
    return params


# ----------------------------------------------------------------------------
# Forward pass
# ----------------------------------------------------------------------------
def bottleneck(x, p):
    stride = p["stride"]
    out = conv_bn(x, p["c1"], stride=1, padding=0, relu=True)
    out = conv_bn(out, p["c2"], stride=stride, padding=1, relu=True)
    if "ds" in p:
        identity = conv_bn(x, p["ds"], stride=stride, padding=0, relu=False)
    else:
        identity = x
    # conv3 + BN + residual add + ReLU, fused in one Pallas GEMM kernel.
    out = conv_bn(out, p["c3"], stride=1, padding=0, relu=True,
                  residual=identity)
    return out


def resnet50_dropout_forward(x_nchw, params, rate=0.3):
    x = jnp.transpose(x_nchw, (0, 2, 3, 1)).astype(jnp.float32)  # NCHW -> NHWC
    out1 = conv_bn(x, params["conv1"], stride=2, padding=3, relu=True)
    out1 = maxpool_3x3_s2_p1(out1)
    out1 = dropout2d(out1, rate)

    out2 = out1
    for p in params["layer1"]:
        out2 = bottleneck(out2, p)
    out2 = dropout2d(out2, rate)

    out3 = out2
    for p in params["layer2"]:
        out3 = bottleneck(out3, p)
    out3 = dropout2d(out3, rate)

    out4 = out3
    for p in params["layer3"]:
        out4 = bottleneck(out4, p)
    out4 = dropout2d(out4, rate)

    out5 = out4
    for p in params["layer4"]:
        out5 = bottleneck(out5, p)
    out5 = dropout2d(out5, rate)

    to_nchw = lambda t: jnp.transpose(t, (0, 3, 1, 2))
    return to_nchw(out2), to_nchw(out3), to_nchw(out4), to_nchw(out5)


if __name__ == "__main__":
    key = jax.random.PRNGKey(0)
    kp, kx = jax.random.split(key)
    params = init_params(kp)
    # Small input consistent with the module: NCHW, 3 input channels.
    x = jax.random.normal(kx, (2, 3, 32, 32), jnp.float32)

    outs = resnet50_dropout_forward(x, params)
    outs = jax.block_until_ready(outs)

    expected = [(2, 256, 8, 8), (2, 512, 4, 4), (2, 1024, 2, 2), (2, 2048, 1, 1)]
    got = [tuple(int(d) for d in o.shape) for o in outs]
    assert got == expected, f"shape mismatch: {got} vs {expected}"
    assert all(bool(jnp.all(jnp.isfinite(o))) for o in outs), "non-finite output"
    print("KERNEL_OK")
</pallas_src>

<mosaic_0001>
module attributes {stable_mosaic.version = 11 : i64} {
  func.func @_gemm_bias_kernel(%arg0: i32, %arg1: i32, %arg2: memref<128x147xbf16, #tpu.memory_space<vmem>>, %arg3: memref<147x64xbf16, #tpu.memory_space<vmem>>, %arg4: memref<1x64xf32, #tpu.memory_space<vmem>>, %arg5: memref<128x64xf32, #tpu.memory_space<vmem>>) attributes {dimension_semantics = [#tpu.dimension_semantics<parallel>, #tpu.dimension_semantics<parallel>], iteration_bounds = array<i64: 1, 4>, scalar_prefetch = 0 : i64, scratch_operands = 0 : i64, tpu.core_type = #tpu.core_type<tc>, window_params = [{transform_indices = @transform_0, window_bounds = array<i64: 128, 147>}, {transform_indices = @transform_1, window_bounds = array<i64: 147, 64>}, {transform_indices = @transform_2, window_bounds = array<i64: 1, 64>}, {transform_indices = @transform_3, window_bounds = array<i64: 128, 64>}]} {
    %c0 = arith.constant 0 : index
    %c0_0 = arith.constant 0 : index
    %0 = vector.load %arg2[%c0, %c0_0] : memref<128x147xbf16, #tpu.memory_space<vmem>>, vector<128x147xbf16>
    %c0_1 = arith.constant 0 : index
    %c0_2 = arith.constant 0 : index
    %1 = vector.load %arg3[%c0_1, %c0_2] : memref<147x64xbf16, #tpu.memory_space<vmem>>, vector<147x64xbf16>
    %cst = arith.constant dense<0.000000e+00> : vector<128x64xf32>
    %2 = tpu.matmul %0, %1, %cst {dimension_numbers = #tpu.dot_dimension_numbers<[1], [0], [0], [1], [0, 0, 1, 1], [], []>} : vector<128x147xbf16>, vector<147x64xbf16>, vector<128x64xf32> -> vector<128x64xf32>
    %c0_3 = arith.constant 0 : index
    %c0_4 = arith.constant 0 : index
    %3 = vector.load %arg4[%c0_3, %c0_4] : memref<1x64xf32, #tpu.memory_space<vmem>>, vector<1x64xf32>
    %4 = vector.broadcast %3 : vector<1x64xf32> to vector<128x64xf32>
    %5 = arith.addf %2, %4 : vector<128x64xf32>
    %cst_5 = arith.constant 0.000000e+00 : f32
    %6 = vector.broadcast %cst_5 : f32 to vector<128x64xf32>
    %7 = arith.maximumf %5, %6 : vector<128x64xf32>
    %c0_6 = arith.constant 0 : index
    %c0_7 = arith.constant 0 : index
    %8 = vector.load %arg5[%c0_6, %c0_7] : memref<128x64xf32, #tpu.memory_space<vmem>>, vector<128x64xf32>
    tpu.vector_store %arg5[%c0_6, %c0_7], %7 {strides = array<i32>} : memref<128x64xf32, #tpu.memory_space<vmem>>, vector<128x64xf32>,
    return
  }
  func.func @transform_0(%arg0: i32, %arg1: i32) -> (i32, i32) {
    %c0_i32 = arith.constant 0 : i32
    %c0_i32_0 = arith.constant 0 : i32
    return %arg1, %c0_i32 : i32, i32
  }
  func.func @transform_1(%arg0: i32, %arg1: i32) -> (i32, i32) {
    %c0_i32 = arith.constant 0 : i32
    %c0_i32_0 = arith.constant 0 : i32
    return %c0_i32, %arg0 : i32, i32
  }
  func.func @transform_2(%arg0: i32, %arg1: i32) -> (i32, i32) {
    %c0_i32 = arith.constant 0 : i32
    %c0_i32_0 = arith.constant 0 : i32
    return %c0_i32, %arg0 : i32, i32
  }
  func.func @transform_3(%arg0: i32, %arg1: i32) -> (i32, i32) {
    %c0_i32 = arith.constant 0 : i32
    return %arg1, %arg0 : i32, i32
  }
}

</mosaic_0001>

<llo_original>
// kernel: tpu_custom_call.1
$region0: #{tpu_custom_call.1}
  #allocation0 [shape = 'u32[]', space=smem, size = 0x4, offset = 0x4, fixed_abs, tag = 'smem constant byte address 0x4 - core index']
  #allocation1 [shape = 'u32[144,128]{1,0:T(1,128)}', space=vmem, size = 0x12000, scoped, tag = 'internal scratch']
  %s0 = inlined_call_operand.vmem [shape: bf16[512,147], index: 0, kind: input, shape index: {}]
  %s1 = inlined_call_operand.vmem [shape: bf16[147,64], index: 1, kind: input, shape index: {}]
  %s2 = inlined_call_operand.vmem [shape: f32[1,64], index: 2, kind: input, shape index: {}]
  %s3 = inlined_call_operand.vmem [shape: f32[512,64], index: 3, kind: output, shape index: {}]
  %s4 = sld [smem:[#allocation0]]
  $region45: #{tpu_custom_call.1} parent=0
    _
  %s6 = ssub.s32 1, %s4
  %s7 = scalar_select 0, %s6, %s4
  loop: start=0, step=1, limit=6
  $region2: #{tpu_custom_call.1} parent=0 // loop_pre_header
    _
  $region3: #{tpu_custom_call.1} parent=0 // loop_header
    %s9 = sphi 0, %s13
    %p10 = scmp.ge.s32.totalorder %s9, 6
    %s16 = sphi 0, %s28
    %s17 = sphi 0, %s24
    %s18 = sphi 0, %s16
    %s19 = sphi 0, %s17
    %s20 = sphi 0, %s18
    %s21 = sphi 0, %s19
    %s31 = sphi 0, %s33
    %s34 = sphi 0, %s31
    %s35 = sphi 0, %s34
    %s51 = sphi 0, %s35
    %s57 = sphi 0, %s59
    %s60 = sphi 0, %s57
    %s61 = sphi 0, %s60
    %s77 = sphi 0, %s61
    %s83 = sphi 0, %s85
    %s86 = sphi 0, %s83
    %s87 = sphi 0, %s86
    %s103 = sphi 0, %s87
    %s111 = sphi 0, %s113
    %s114 = sphi 0, %s111
    %s115 = sphi 0, %s114
    %s131 = sphi 0, %s115
  $region4: #{tpu_custom_call.1} parent=0 // loop_header_branch
    %12 = sbr.rel (%p10) target = $region8
  $region5: #{tpu_custom_call.1} parent=0 // loop_body
    %s14 = ssub.s32 %s9, 1
    %s15 = ssub.s32 %s9, 2
    %s22 = sadd.s32 1, %s17
    %p23 = scmp.ge.s32.totalorder %s22, 4
    %s24 = scalar_select %p23, 0, %s22
    %s25 = sadd.s32 1, %s16
    %s26 = scalar_select %p23, %s25, %s16
    %p27 = scmp.ge.s32.totalorder %s26, 1
    %s28 = scalar_select %p27, 0, %s26
    %s29 = ssub.s32 %s17, %s24
    %p30 = scmp.eq.s32.totalorder %s29, 0
    %s32 = sadd.s32 %s31, 1
    %s33 = scalar_select %p30, %s31, %s32
    %p36 = pneg %p30
    %p37 = scmp.eq.s32.totalorder %s9, 3
    %p38 = por %p36, %p37
    %p39 = scmp.ne.s32.totalorder %s31, %s34
    %p40 = scmp.eq.s32.totalorder %s9, 0
    %p41 = por %p39, %p40
    %p42 = scmp.ne.s32.totalorder %s31, %s34
    %p43 = scmp.eq.s32.totalorder %s14, 3
    %p44 = por %p42, %p43
    %p45 = scmp.ne.s32.totalorder %s34, %s35
    %p46 = scmp.eq.s32.totalorder %s14, 0
    %p47 = por %p45, %p46
    %p48 = scmp.ne.s32.totalorder %s34, %s35
    %p49 = scmp.eq.s32.totalorder %s15, 3
    %p50 = por %p48, %p49
    %p52 = scmp.ne.s32.totalorder %s35, %s51
    %p53 = scmp.eq.s32.totalorder %s15, 0
    %p54 = por %p52, %p53
    %s55 = ssub.s32 %s16, %s28
    %p56 = scmp.eq.s32.totalorder %s55, 0
    %s58 = sadd.s32 %s57, 1
    %s59 = scalar_select %p56, %s57, %s58
    %p62 = pneg %p56
    %p63 = scmp.eq.s32.totalorder %s9, 3
    %p64 = por %p62, %p63
    %p65 = scmp.ne.s32.totalorder %s57, %s60
    %p66 = scmp.eq.s32.totalorder %s9, 0
    %p67 = por %p65, %p66
    %p68 = scmp.ne.s32.totalorder %s57, %s60
    %p69 = scmp.eq.s32.totalorder %s14, 3
    %p70 = por %p68, %p69
    %p71 = scmp.ne.s32.totalorder %s60, %s61
    %p72 = scmp.eq.s32.totalorder %s14, 0
    %p73 = por %p71, %p72
    %p74 = scmp.ne.s32.totalorder %s60, %s61
    %p75 = scmp.eq.s32.totalorder %s15, 3
    %p76 = por %p74, %p75
    %p78 = scmp.ne.s32.totalorder %s61, %s77
    %p79 = scmp.eq.s32.totalorder %s15, 0
    %p80 = por %p78, %p79
    %s81 = ssub.s32 %s16, %s28
    %p82 = scmp.eq.s32.totalorder %s81, 0
    %s84 = sadd.s32 %s83, 1
    %s85 = scalar_select %p82, %s83, %s84
    %p88 = pneg %p82
    %p89 = scmp.eq.s32.totalorder %s9, 3
    %p90 = por %p88, %p89
    %p91 = scmp.ne.s32.totalorder %s83, %s86
    %p92 = scmp.eq.s32.totalorder %s9, 0
    %p93 = por %p91, %p92
    %p94 = scmp.ne.s32.totalorder %s83, %s86
    %p95 = scmp.eq.s32.totalorder %s14, 3
    %p96 = por %p94, %p95
    %p97 = scmp.ne.s32.totalorder %s86, %s87
    %p98 = scmp.eq.s32.totalorder %s14, 0
    %p99 = por %p97, %p98
    %p100 = scmp.ne.s32.totalorder %s86, %s87
    %p101 = scmp.eq.s32.totalorder %s15, 3
    %p102 = por %p100, %p101
    %p104 = scmp.ne.s32.totalorder %s87, %s103
    %p105 = scmp.eq.s32.totalorder %s15, 0
    %p106 = por %p104, %p105
    %s107 = ssub.s32 %s17, %s24
    %s108 = ssub.s32 %s16, %s28
    %s109 = sor.u32 %s107, %s108
    %p110 = scmp.eq.s32.totalorder %s109, 0
    %s112 = sadd.s32 %s111, 1
    %s113 = scalar_select %p110, %s111, %s112
    %p116 = pneg %p110
    %p117 = scmp.eq.s32.totalorder %s9, 3
    %p118 = por %p116, %p117
    %p119 = scmp.ne.s32.totalorder %s111, %s114
    %p120 = scmp.eq.s32.totalorder %s9, 0
    %p121 = por %p119, %p120
    %p122 = scmp.ne.s32.totalorder %s111, %s114
    %p123 = scmp.eq.s32.totalorder %s14, 3
    %p124 = por %p122, %p123
    %p125 = scmp.ne.s32.totalorder %s114, %s115
    %p126 = scmp.eq.s32.totalorder %s14, 0
    %p127 = por %p125, %p126
    %p128 = scmp.ne.s32.totalorder %s114, %s115
    %p129 = scmp.eq.s32.totalorder %s15, 3
    %p130 = por %p128, %p129
    %p132 = scmp.ne.s32.totalorder %s115, %s131
    %p133 = scmp.eq.s32.totalorder %s15, 0
    %p134 = por %p132, %p133
    %p135 = scmp.le.s32.totalorder 1, %s9
    %p136 = scmp.lt.s32.totalorder %s9, 5
    %p137 = pnand %p135, %p136
    %p138 = pneg %p137
    // Predicated region
    $region9: #{tpu_custom_call.1} parent=5 // pred_check
      _
    $region10: #{tpu_custom_call.1} parent=5 // pred_check_branch
      %140 = sbr.rel (%p137) target = $region12
    $region11: #{tpu_custom_call.1} parent=5 // pred_region
      %s141 = ssub.s32 %s9, 1
      // Predicated region
      $region13: #{tpu_custom_call.1} parent=11 // pred_check
        %p142 = pneg %p73
      $region14: #{tpu_custom_call.1} parent=11 // pred_check_branch
        %144 = sbr.rel (%p142) target = $region16
      $region15: #{tpu_custom_call.1} parent=11 // pred_region
        %p145 = scmp.lt.s32.totalorder %s18, 0
        %s146 = scalar_select %p145, %s18, 0
        %s147 = smul.addr %s146, 4
        %s148 = scalar_lea.vmem %s1, %s147
      $region16: #{tpu_custom_call.1} parent=11 // pred_fallthru
        _
      // Predicated region
      $region17: #{tpu_custom_call.1} parent=11 // pred_check
        %p149 = pneg %p99
      $region18: #{tpu_custom_call.1} parent=11 // pred_check_branch
        %151 = sbr.rel (%p149) target = $region20
      $region19: #{tpu_custom_call.1} parent=11 // pred_region
        %p152 = scmp.lt.s32.totalorder %s18, 0
        %s153 = scalar_select %p152, %s18, 0
        %s154 = scalar_lea.vmem %s2, %s153
      $region20: #{tpu_custom_call.1} parent=11 // pred_fallthru
        _
    $region12: #{tpu_custom_call.1} parent=5 // pred_fallthru
      _
    %p155 = scmp.lt.s32.totalorder %s9, 4
    // Predicated region
    $region21: #{tpu_custom_call.1} parent=5 // pred_check
      %p156 = pneg %p155
    $region22: #{tpu_custom_call.1} parent=5 // pred_check_branch
      %158 = sbr.rel (%p156) target = $region24
    $region23: #{tpu_custom_call.1} parent=5 // pred_region
      // Predicated region
      $region25: #{tpu_custom_call.1} parent=23 // pred_check
        %p159 = pneg %p41
      $region26: #{tpu_custom_call.1} parent=23 // pred_check_branch
        %161 = sbr.rel (%p159) target = $region28
      $region27: #{tpu_custom_call.1} parent=23 // pred_region
        %s162 = smul.u32 16, %s17
        %p163 = scmp.lt.s32.totalorder %s162, 63
        %s164 = scalar_select %p163, %s162, 63
        %s165 = smul.addr %s164, 2
        %s166 = smul.addr %s165, 4
        %s167 = scalar_lea.vmem %s0, %s166
        %s168 = smul.u32 16, %s17
      $region28: #{tpu_custom_call.1} parent=23 // pred_fallthru
        _
    $region24: #{tpu_custom_call.1} parent=5 // pred_fallthru
      _
    %p169 = scmp.le.s32.totalorder 1, %s9
    %p170 = scmp.lt.s32.totalorder %s9, 5
    %p171 = pnand %p169, %p170
    %p172 = pneg %p171
    // Predicated region
    $region29: #{tpu_custom_call.1} parent=5 // pred_check
      _
    $region30: #{tpu_custom_call.1} parent=5 // pred_check_branch
      %174 = sbr.rel (%p171) target = $region32
    $region31: #{tpu_custom_call.1} parent=5 // pred_region
      %s175 = ssub.s32 %s9, 1
      %s176 = smul.u32 16, %s19
      %p177 = scmp.lt.s32.totalorder %s176, 63
      %s178 = scalar_select %p177, %s176, 63
      %s179 = smul.addr %s178, 2
      %s180 = smul.addr %s179, 4
      %s181 = scalar_lea.vmem %s0, %s180
      %p182 = pneg %p47
      %p183 = pneg %p44
      %p184 = scmp.lt.s32.totalorder %s18, 0
      %s185 = scalar_select %p184, %s18, 0
      %s186 = smul.addr %s185, 4
      %s187 = scalar_lea.vmem %s1, %s186
      %p188 = pneg %p73
      %p189 = pneg %p70
      %p190 = scmp.lt.s32.totalorder %s18, 0
      %s191 = scalar_select %p190, %s18, 0
      %s192 = scalar_lea.vmem %s2, %s191
      %p193 = pneg %p99
      %p194 = pneg %p96
      %p195 = pneg %p127
      %p196 = pneg %p124
      %s197 = smul.u32 16, %s19
      %p198 = scmp.lt.s32.totalorder %s197, 63
      %s199 = scalar_select %p198, %s197, 63
      %p200 = scmp.lt.s32.totalorder %s18, 0
      %s201 = scalar_select %p200, %s18, 0
      %s202 = sadd.s32 %s201, %s199
      %s203 = smul.addr %s202, 8
      %s204 = scalar_lea.vmem %s3, %s203
      %s205 = smul.u32 16, %s19
      %p206 = scmp.lt.s32.totalorder %s205, 63
      %s207 = scalar_select %p206, %s205, 63
      %s208 = smul.addr %s207, 2
      %s209 = smul.addr %s208, 4
      %s210 = scalar_lea.vmem %s0, %s209
      %s211 = smul.u32 16, %s19
      %p212 = scmp.lt.s32.totalorder %s18, 0
      %s213 = scalar_select %p212, %s18, 0
      %s214 = smul.addr %s213, 4
      %s215 = scalar_lea.vmem %s1, %s214
      %p216 = scmp.lt.s32.totalorder %s18, 0
      %s217 = scalar_select %p216, %s18, 0
      %s218 = scalar_lea.vmem %s2, %s217
      %s219 = smul.u32 16, %s19
      %p220 = scmp.lt.s32.totalorder %s219, 63
      %s221 = scalar_select %p220, %s219, 63
      %p222 = scmp.lt.s32.totalorder %s18, 0
      %s223 = scalar_select %p222, %s18, 0
      %s224 = sadd.s32 %s223, %s221
      %s225 = smul.addr %s224, 8
      %s226 = scalar_lea.vmem %s3, %s225
      %s227 = smul.u32 16, %s19
      %v229 = vld [vmem:[%s210] sm:$0xff]
      %v230 = vld [vmem:[%s210 + $0x8] sm:$0xff]
      %v231 = vld [vmem:[%s210 + $0x10] sm:$0xff]
      %v232 = vld [vmem:[%s210 + $0x18] sm:$0xff]
      %v233 = vld [vmem:[%s210 + $0x20] sm:$0xff]
      %v234 = vld [vmem:[%s210 + $0x28] sm:$0xff]
      %v235 = vld [vmem:[%s210 + $0x30] sm:$0xff]
      %v236 = vld [vmem:[%s210 + $0x38] sm:$0xff]
      %v237 = vld [vmem:[%s210 + $0x40] sm:$0xff]
      %v238 = vld [vmem:[%s210 + $0x48] sm:$0xff]
      %v239 = vld [vmem:[%s210 + $0x50] sm:$0xff]
      %v240 = vld [vmem:[%s210 + $0x58] sm:$0xff]
      %v241 = vld [vmem:[%s210 + $0x60] sm:$0xff]
      %v242 = vld [vmem:[%s210 + $0x68] sm:$0xff]
      %v243 = vld [vmem:[%s210 + $0x70] sm:$0xff]
      %v244 = vld [vmem:[%s210 + $0x78] sm:$0xff]
      %v245 = vld [vmem:[%s215] sm:$0xf]
      %v246 = vld [vmem:[%s215 + $0x4] sm:$0xf]
      %v247 = vld [vmem:[%s215 + $0x8] sm:$0xf]
      %v248 = vld [vmem:[%s215 + $0xc] sm:$0xf]
      %v249 = vld [vmem:[%s215 + $0x10] sm:$0xf]
      %v250 = vld [vmem:[%s215 + $0x14] sm:$0xf]
      %v251 = vld [vmem:[%s215 + $0x18] sm:$0xf]
      %v252 = vld [vmem:[%s215 + $0x1c] sm:$0xf]
      %v253 = vld [vmem:[%s215 + $0x20] sm:$0xf]
      %v254 = vld [vmem:[%s215 + $0x24] sm:$0xf]
      %v255 = vld [vmem:[%s215 + $0x28] sm:$0xf]
      %v256 = vld [vmem:[%s215 + $0x2c] sm:$0xf]
      %v257 = vld [vmem:[%s215 + $0x30] sm:$0xf]
      %v258 = vld [vmem:[%s215 + $0x34] sm:$0xf]
      %v259 = vld [vmem:[%s215 + $0x38] sm:$0xf]
      %v260 = vld [vmem:[%s215 + $0x3c] sm:$0xf]
      %v261 = vld [vmem:[%s215 + $0x40] sm:$0xf]
      %v262 = vld [vmem:[%s215 + $0x44] sm:$0xf]
      %v263 = vld [vmem:[%s215 + $0x48] sm:$0x3]
      %v264 = vld [vmem:[%s218] sm:$0x1]
      %v266 = vlaneseq
      %v267 = vshrl.u32 %v266, 7
      %v268 = vsub.s32 0, %v267
      %v269 = vrot.slane %v264, %v268
      %v287 = vunpack.c.l.b16 %v229
      %v288 = vunpack.c.h.b16 %v229
      %v289 = vunpack.c.l.b16 %v230
      %v290 = vunpack.c.h.b16 %v230
      %v291 = vunpack.c.l.b16 %v231
      %v292 = vunpack.c.h.b16 %v231
      %v293 = vunpack.c.l.b16 %v232
      %v294 = vunpack.c.h.b16 %v232
      %v295 = vunpack.c.l.b16 %v233
      %v296 = vunpack.c.h.b16 %v233
      %v297 = vunpack.c.l.b16 %v234
      %v298 = vunpack.c.h.b16 %v234
      %v299 = vunpack.c.l.b16 %v235
      %v300 = vunpack.c.h.b16 %v235
      %v301 = vunpack.c.l.b16 %v236
      %v302 = vunpack.c.h.b16 %v236
      %v303 = vunpack.c.l.b16 %v237
      %v304 = vunpack.c.h.b16 %v237
      %v305 = vunpack.c.l.b16 %v238
      %v306 = vunpack.c.h.b16 %v238
      %v307 = vunpack.c.l.b16 %v239
      %v308 = vunpack.c.h.b16 %v239
      %v309 = vunpack.c.l.b16 %v240
      %v310 = vunpack.c.h.b16 %v240
      %v311 = vunpack.c.l.b16 %v241
      %v312 = vunpack.c.h.b16 %v241
      %v313 = vunpack.c.l.b16 %v242
      %v314 = vunpack.c.h.b16 %v242
      %v315 = vunpack.c.l.b16 %v243
      %v316 = vunpack.c.h.b16 %v243
      %v317 = vunpack.c.l.b16 %v244
      %v318 = vunpack.c.h.b16 %v244
      %v319 = vpack.c.b16 %v289, %v287
      %v320 = vpack.c.b16 %v290, %v288
      %v321 = vpack.c.b16 %v293, %v291
      %v322 = vpack.c.b16 %v294, %v292
      %v323 = vpack.c.b16 %v297, %v295
      %v324 = vpack.c.b16 %v298, %v296
      %v325 = vpack.c.b16 %v301, %v299
      %v326 = vpack.c.b16 %v302, %v300
      %v327 = vpack.c.b16 %v305, %v303
      %v328 = vpack.c.b16 %v306, %v304
      %v329 = vpack.c.b16 %v309, %v307
      %v330 = vpack.c.b16 %v310, %v308
      %v331 = vpack.c.b16 %v313, %v311
      %v332 = vpack.c.b16 %v314, %v312
      %v333 = vpack.c.b16 %v317, %v315
      %v334 = vpack.c.b16 %v318, %v316
      %v362 = vunpack.c.l.b16 %v245
      %v363 = vunpack.c.l.b16 %v246
      %v364 = vunpack.c.l.b16 %v247
      %v365 = vunpack.c.l.b16 %v248
      %v366 = vunpack.c.l.b16 %v249
      %v367 = vunpack.c.l.b16 %v250
      %v368 = vunpack.c.l.b16 %v251
      %v369 = vunpack.c.l.b16 %v252
      %v370 = vunpack.c.l.b16 %v253
      %v371 = vunpack.c.l.b16 %v254
      %v372 = vunpack.c.l.b16 %v255
      %v373 = vunpack.c.l.b16 %v256
      %v374 = vunpack.c.l.b16 %v257
      %v375 = vunpack.c.l.b16 %v258
      %v376 = vunpack.c.l.b16 %v259
      %v377 = vunpack.c.l.b16 %v260
      %v378 = vunpack.c.l.b16 %v261
      %v379 = vunpack.c.l.b16 %v262
      %v380 = vunpack.c.l.b16 %v263
      %v381 = vpack.c.b16 %v363, %v362
      %v382 = vpack.c.b16 %v365, %v364
      %v383 = vpack.c.b16 %v367, %v366
      %v384 = vpack.c.b16 %v369, %v368
      %v385 = vpack.c.b16 %v371, %v370
      %v386 = vpack.c.b16 %v373, %v372
      %v387 = vpack.c.b16 %v375, %v374
      %v388 = vpack.c.b16 %v377, %v376
      %v389 = vpack.c.b16 %v379, %v378
      %v390 = vpack.c.b16 %v380, %v380
      %vm400 = vcmask 154624
      %v402 = vsel %vm400, %v320, 0
      %v405 = vsel %vm400, %v322, 0
      %v408 = vsel %vm400, %v324, 0
      %v411 = vsel %vm400, %v326, 0
      %v414 = vsel %vm400, %v328, 0
      %v417 = vsel %vm400, %v330, 0
      %v420 = vsel %vm400, %v332, 0
      %v423 = vsel %vm400, %v334, 0
      %vm425 = vcmask 1040384
      %vm426 = vcmask 1041408
      %v427 = vsel %vm425, 4294967295, 65535
      %v428 = vsel %vm426, %v427, 0
      %v430 = vand.u32 %v390, %v428
      %432 = vmatprep.subr.bf16.mxu0 0
      %433 = vmatpush1.bf16.msra.mxu0 %v388
      %434 = vmatprep.subr.bf16.mxu0 0
      %435 = vmatpush1.bf16.msra.mxu0 %v387
      %436 = vmatprep.subr.bf16.mxu0 0
      %437 = vmatpush1.bf16.msra.mxu0 %v386
      %438 = vmatprep.subr.bf16.mxu0 0
      %439 = vmatpush1.bf16.msra.mxu0 %v385
      %440 = vmatprep.subr.bf16.mxu0 0
      %441 = vmatpush1.bf16.msra.mxu0 %v384
      %442 = vmatprep.subr.bf16.mxu0 0
      %443 = vmatpush1.bf16.msra.mxu0 %v383
      %444 = vmatprep.subr.bf16.mxu0 0
      %445 = vmatpush1.bf16.msra.mxu0 %v382
      %446 = vmatprep.subr.bf16.mxu0 0
      %447 = vmatpush1.bf16.msra.mxu0 %v381
      %448 = vmatprep.subr.bf16.mxu0 0
      %449 = vmatpush2.bf16.msra.mxu0 0
      %450 = vmatprep.subr.bf16.mxu0 0
      %451 = vmatpush2.bf16.msra.mxu0 0
      %452 = vmatprep.subr.bf16.mxu0 0
      %453 = vmatpush2.bf16.msra.mxu0 0
      %454 = vmatprep.subr.bf16.mxu0 0
      %455 = vmatpush2.bf16.msra.mxu0 0
      %456 = vmatprep.subr.bf16.mxu0 0
      %457 = vmatpush2.bf16.msra.mxu0 0
      %458 = vmatprep.subr.bf16.mxu0 0
      %459 = vmatpush2.bf16.msra.mxu0 0
      %460 = vmatprep.subr.bf16.mxu0 0
      %461 = vmatpush2.bf16.msra.mxu0 %v430
      %462 = vmatprep.subr.bf16.mxu0 0
      %463 = vmatpush2.bf16.msra.mxu0 %v389
      %464 = vmatprep.mubr.bf16.mxu0 %v402
      %465 = vmatmul.mubr.bf16.gmra.mxu0 %v319
      %v466 = vpop.f32.mrf.mxu0
      %v467 = vadd.f32 %v269, %v466
      %v468 = vpop.f32.mrf.mxu0
      %v469 = vpop.f32.mrf.mxu0
      %v470 = vadd.f32 %v269, %v469
      %v471 = vpop.f32.mrf.mxu0
      %472 = vmatprep.mubr.bf16.mxu0 %v405
      %473 = vmatmul.mubr.bf16.gmra.mxu0 %v321
      %v474 = vpop.f32.mrf.mxu0
      %v475 = vadd.f32 %v269, %v474
      %v476 = vpop.f32.mrf.mxu0
      %v477 = vpop.f32.mrf.mxu0
      %v478 = vadd.f32 %v269, %v477
      %v479 = vpop.f32.mrf.mxu0
      %480 = vmatprep.mubr.bf16.mxu0 %v408
      %481 = vmatmul.mubr.bf16.gmra.mxu0 %v323
      %v482 = vpop.f32.mrf.mxu0
      %v483 = vadd.f32 %v269, %v482
      %v484 = vpop.f32.mrf.mxu0
      %v485 = vpop.f32.mrf.mxu0
      %v486 = vadd.f32 %v269, %v485
      %v487 = vpop.f32.mrf.mxu0
      %488 = vmatprep.mubr.bf16.mxu0 %v411
      %489 = vmatmul.mubr.bf16.gmra.mxu0 %v325
      %v490 = vpop.f32.mrf.mxu0
      %v491 = vadd.f32 %v269, %v490
      %v492 = vpop.f32.mrf.mxu0
      %v493 = vpop.f32.mrf.mxu0
      %v494 = vadd.f32 %v269, %v493
      %v495 = vpop.f32.mrf.mxu0
      %496 = vmatprep.mubr.bf16.mxu0 %v414
      %497 = vmatmul.mubr.bf16.gmra.mxu0 %v327
      %v498 = vpop.f32.mrf.mxu0
      %v499 = vadd.f32 %v269, %v498
      %v500 = vpop.f32.mrf.mxu0
      %v501 = vpop.f32.mrf.mxu0
      %v502 = vadd.f32 %v269, %v501
      %v503 = vpop.f32.mrf.mxu0
      %504 = vmatprep.mubr.bf16.mxu0 %v417
      %505 = vmatmul.mubr.bf16.gmra.mxu0 %v329
      %v506 = vpop.f32.mrf.mxu0
      %v507 = vadd.f32 %v269, %v506
      %v508 = vpop.f32.mrf.mxu0
      %v509 = vpop.f32.mrf.mxu0
      %v510 = vadd.f32 %v269, %v509
      %v511 = vpop.f32.mrf.mxu0
      %512 = vmatprep.mubr.bf16.mxu0 %v420
      %513 = vmatmul.mubr.bf16.gmra.mxu0 %v331
      %v514 = vpop.f32.mrf.mxu0
      %v515 = vadd.f32 %v269, %v514
      %v516 = vpop.f32.mrf.mxu0
      %v517 = vpop.f32.mrf.mxu0
      %v518 = vadd.f32 %v269, %v517
      %v519 = vpop.f32.mrf.mxu0
      %520 = vmatprep.mubr.bf16.mxu0 %v423
      %521 = vmatmul.mubr.bf16.gmra.mxu0 %v333
      %v522 = vpop.f32.mrf.mxu0
      %v523 = vadd.f32 %v269, %v522
      %v524 = vpop.f32.mrf.mxu0
      %v525 = vpop.f32.mrf.mxu0
      %v526 = vadd.f32 %v269, %v525
      %v527 = vpop.f32.mrf.mxu0
      %528 = vdwg.mxu0
      %v529 = vmax.f32 %v467, 0.0
      %v530 = vmax.f32 %v470, 0.0
      %v531 = vmax.f32 %v475, 0.0
      %v532 = vmax.f32 %v478, 0.0
      %v533 = vmax.f32 %v483, 0.0
      %v534 = vmax.f32 %v486, 0.0
      %v535 = vmax.f32 %v491, 0.0
      %v536 = vmax.f32 %v494, 0.0
      %v537 = vmax.f32 %v499, 0.0
      %v538 = vmax.f32 %v502, 0.0
      %v539 = vmax.f32 %v507, 0.0
      %v540 = vmax.f32 %v510, 0.0
      %v541 = vmax.f32 %v515, 0.0
      %v542 = vmax.f32 %v518, 0.0
      %v543 = vmax.f32 %v523, 0.0
      %v544 = vmax.f32 %v526, 0.0
      %vm545 = vcmask 523264
      %546 = vst.msk [vmem:[%s226] sm:$0xff] %vm545, %v529
      %547 = vst.msk [vmem:[%s226 + $0x8] sm:$0xff] %vm545, %v530
      %548 = vst.msk [vmem:[%s226 + $0x10] sm:$0xff] %vm545, %v531
      %549 = vst.msk [vmem:[%s226 + $0x18] sm:$0xff] %vm545, %v532
      %550 = vst.msk [vmem:[%s226 + $0x20] sm:$0xff] %vm545, %v533
      %551 = vst.msk [vmem:[%s226 + $0x28] sm:$0xff] %vm545, %v534
      %552 = vst.msk [vmem:[%s226 + $0x30] sm:$0xff] %vm545, %v535
      %553 = vst.msk [vmem:[%s226 + $0x38] sm:$0xff] %vm545, %v536
      %554 = vst.msk [vmem:[%s226 + $0x40] sm:$0xff] %vm545, %v537
      %555 = vst.msk [vmem:[%s226 + $0x48] sm:$0xff] %vm545, %v538
      %556 = vst.msk [vmem:[%s226 + $0x50] sm:$0xff] %vm545, %v539
      %557 = vst.msk [vmem:[%s226 + $0x58] sm:$0xff] %vm545, %v540
      %558 = vst.msk [vmem:[%s226 + $0x60] sm:$0xff] %vm545, %v541
      %559 = vst.msk [vmem:[%s226 + $0x68] sm:$0xff] %vm545, %v542
      %560 = vst.msk [vmem:[%s226 + $0x70] sm:$0xff] %vm545, %v543
      %561 = vst.msk [vmem:[%s226 + $0x78] sm:$0xff] %vm545, %v544
      %s562 = smul.u32 16, %s19
      %p563 = scmp.lt.s32.totalorder %s562, 63
      %s564 = scalar_select %p563, %s562, 63
      %p565 = scmp.lt.s32.totalorder %s18, 0
      %s566 = scalar_select %p565, %s18, 0
      %s567 = sadd.s32 %s566, %s564
      %s568 = smul.addr %s567, 8
      %s569 = scalar_lea.vmem %s3, %s568
      // Predicated region
      $region33: #{tpu_custom_call.1} parent=31 // pred_check
        %p570 = pneg %p124
      $region34: #{tpu_custom_call.1} parent=31 // pred_check_branch
        %572 = sbr.rel (%p570) target = $region36
      $region35: #{tpu_custom_call.1} parent=31 // pred_region
        %s573 = smul.u32 16, %s19
      $region36: #{tpu_custom_call.1} parent=31 // pred_fallthru
        _
    $region32: #{tpu_custom_call.1} parent=5 // pred_fallthru
      _
    %p574 = scmp.le.s32.totalorder 2, %s9
    // Predicated region
    $region37: #{tpu_custom_call.1} parent=5 // pred_check
      %p575 = pneg %p574
    $region38: #{tpu_custom_call.1} parent=5 // pred_check_branch
      %577 = sbr.rel (%p575) target = $region40
    $region39: #{tpu_custom_call.1} parent=5 // pred_region
      %s578 = ssub.s32 %s9, 2
      // Predicated region
      $region41: #{tpu_custom_call.1} parent=39 // pred_check
        %p579 = pneg %p130
      $region42: #{tpu_custom_call.1} parent=39 // pred_check_branch
        %581 = sbr.rel (%p579) target = $region44
      $region43: #{tpu_custom_call.1} parent=39 // pred_region
        %s582 = smul.u32 16, %s21
        %p583 = scmp.lt.s32.totalorder %s582, 63
        %s584 = scalar_select %p583, %s582, 63
        %p585 = scmp.lt.s32.totalorder %s20, 0
        %s586 = scalar_select %p585, %s20, 0
        %s587 = sadd.s32 %s586, %s584
        %s588 = smul.addr %s587, 8
        %s589 = scalar_lea.vmem %s3, %s588
      $region44: #{tpu_custom_call.1} parent=39 // pred_fallthru
        _
    $region40: #{tpu_custom_call.1} parent=5 // pred_fallthru
      _
  $region6: #{tpu_custom_call.1} parent=0 // loop_footer
    %s13 = sadd.s32 1, %s9
  $region7: #{tpu_custom_call.1} parent=0 // loop_footer_branch
    %8 = sbr.rel target = $region3
  $region8: #{tpu_custom_call.1} parent=0 // loop_exit
    _

</llo_original>
